<compile_context>
chip_gen: v5e
topology: v5e:2x2
jax: 0.10.0
libtpu: 0.0.40
codegen_flags: <defaults>
</compile_context>

<pallas_src>
import jax
import jax.numpy as jnp
from jax.experimental import pallas as pl
from jax.experimental.pallas import tpu as pltpu


# ------------------------------------------------------------------ tiling ---

_TILE_B_CAP = 1024            # max rows per batch tile (multiple of 128)
_VMEM_TILE_BUDGET = 40 << 20  # per-step working-set budget; fits v7x 64 MiB phys


def _cdiv(a, b):
    return -(-a // b)


def _round_up(a, b):
    return _cdiv(a, b) * b


def _tile_vmem_bytes(tb, K, W):
    """Rough per-grid-step VMEM footprint (default double-buffering assumed)."""
    return (2 * tb * K * 2        # x tile, double-buffered, bf16
            + 2 * K * W * 2       # w1 (constant block; 2 buffers still allocated)
            + 4 * W * 4           # b1, w2 rows (2 buffers each), f32
            + 2 * tb * 4          # [1, tb] output row, double-buffered
            + 2 * tb * W * 4)     # f32 h intermediate + headroom for temporaries


def _choose_batch_tile(B, K, W):
    """Pick a batch tile: multiple of 128, big (amortize ~0.35us/step overhead),
    >= 2 blocks when possible (v7x dual-TC), and within the VMEM budget."""
    bp_min = _round_up(max(B, 1), 128)
    tb = min(_round_up(_TILE_B_CAP, 128), bp_min)
    if tb == bp_min and tb > 128:
        # Keep at least 2 grid blocks so the "parallel" axis can occupy both
        # TensorCores on v7x (no-op on single-TC v5e/v6e).
        tb = _round_up(_cdiv(bp_min, 2), 128)
    while tb > 128 and _tile_vmem_bytes(tb, K, W) > _VMEM_TILE_BUDGET:
        tb -= 128
    n_blocks = _cdiv(bp_min, tb)
    return tb, n_blocks, n_blocks * tb


# ------------------------------------------------------------------ kernel ---

def shallom_kernel(x_ref, w1_ref, b1_ref, w2_ref, b2_ref, o_ref):
    """Fused head: (BN-folded) Linear1 -> ReLU -> width-1 Linear2 -> sigmoid.

    x_ref  : [tb, 3D] bf16 (gathered head|rel|tail slab)
    w1_ref : [3D, W]  bf16 (BatchNorm folded in)
    b1_ref : [1, W]   f32  (BatchNorm folded in)
    w2_ref : [1, W]   f32
    b2_ref : [1, 1]   f32
    o_ref  : [1, tb]  f32  (lane-dense output row)
    """
    # One bf16 MXU dot over the whole 3D contraction, f32 accumulation.
    h = jnp.dot(x_ref[...], w1_ref[...], preferred_element_type=jnp.float32)
    # TODO(synk): training-mode dropout (stochastic masking) not implemented.
    h = jnp.maximum(h + b1_ref[...], 0.0)                 # folded BN + ReLU
    # Width-1 Linear2: VPU broadcast-multiply + cross-lane reduce (keeps the
    # single-output-column matmul off the MXU).
    y = jnp.sum(h * w2_ref[...], axis=-1)                 # [tb]
    # Lane-dense store: [1, tb] row -> unmasked vst across all 128 lanes.
    o_ref[...] = jax.nn.sigmoid(y[None, :] + b2_ref[...])


def shallom_forward(x, w1, b1, w2_row, b2, tb, n_blocks):
    """Batch-tiled fused MLP head. x: [Bp, 3D] bf16, Bp = n_blocks * tb."""
    Bp, K = x.shape
    W = w1.shape[1]

    # Explicit VMEM budget: scoped defaults (16 MiB v5e / 32 MiB v6e+v7x) are
    # too small once the batch tile grows; raise to the actual need + headroom.
    vmem_limit = int(min(max(_tile_vmem_bytes(tb, K, W) + (8 << 20), 32 << 20),
                         100 << 20))
    # TODO(synk): for very large D (weights >~ budget) stream w1 over a second
    # "arbitrary" W grid axis with a y-accumulator instead of keeping it resident.

    cost = pl.CostEstimate(
        flops=2 * Bp * K * W + 2 * Bp * W,
        transcendentals=Bp,
        bytes_accessed=Bp * K * 2 + K * W * 2 + 2 * W * 4 + 4 + Bp * 4)

    return pl.pallas_call(
        shallom_kernel,
        out_shape=jax.ShapeDtypeStruct((1, Bp), jnp.float32),
        grid=(n_blocks,),
        in_specs=[
            pl.BlockSpec((tb, K), lambda i: (i, 0)),   # streamed activations
            pl.BlockSpec((K, W), lambda i: (0, 0)),    # VMEM-resident weights
            pl.BlockSpec((1, W), lambda i: (0, 0)),
            pl.BlockSpec((1, W), lambda i: (0, 0)),
            pl.BlockSpec((1, 1), lambda i: (0, 0)),
        ],
        out_specs=pl.BlockSpec((1, tb), lambda i: (0, i)),  # lane-dense out row
        compiler_params=pltpu.CompilerParams(
            dimension_semantics=("parallel",),
            vmem_limit_bytes=vmem_limit),
        cost_estimate=cost,
    )(x, w1, b1, w2_row, b2)


# -------------------------------------------------------------- parameters ---

def init_params(key, num_entities, num_relations, embedding_dim):
    """Raw (unfolded, f32) parameters matching the PyTorch module layout."""
    shallom_width = int(12.8 * embedding_dim)
    ks = jax.random.split(key, 10)
    ent_emb = jax.random.normal(ks[0], (num_entities, embedding_dim), jnp.float32)
    rel_emb = jax.random.normal(ks[1], (num_relations, embedding_dim), jnp.float32)
    # Linear1: weight pre-transposed to [3D, W], bias [W]
    w1 = jax.random.normal(ks[2], (3 * embedding_dim, shallom_width), jnp.float32) * 0.1
    b1 = jax.random.normal(ks[3], (shallom_width,), jnp.float32) * 0.1
    # BatchNorm1d (eval) statistics
    gamma = 1.0 + 0.1 * jax.random.normal(ks[4], (shallom_width,), jnp.float32)
    beta = 0.1 * jax.random.normal(ks[5], (shallom_width,), jnp.float32)
    running_mean = 0.1 * jax.random.normal(ks[6], (shallom_width,), jnp.float32)
    running_var = jnp.abs(
        1.0 + 0.1 * jax.random.normal(ks[7], (shallom_width,), jnp.float32))
    # Linear2: weight pre-transposed to [W, 1], bias [1]
    w2 = jax.random.normal(ks[8], (shallom_width, 1), jnp.float32) * 0.1
    b2 = jax.random.normal(ks[9], (1,), jnp.float32) * 0.1
    return {
        "ent_emb": ent_emb, "rel_emb": rel_emb,
        "w1": w1, "b1": b1,
        "gamma": gamma, "beta": beta,
        "running_mean": running_mean, "running_var": running_var, "eps": 1e-5,
        "w2": w2, "b2": b2,
        "embedding_dim": embedding_dim,
    }


def prepare_kernel_params(p):
    """Host-side prep: fold BN into Linear1, cast tables + w1 to bf16."""
    scale = p["gamma"] * jax.lax.rsqrt(p["running_var"] + p["eps"])
    shift = p["beta"] - p["running_mean"] * scale
    return {
        # bf16 embedding tables: halves the streamed activation HBM traffic.
        "ent_emb": p["ent_emb"].astype(jnp.bfloat16),
        "rel_emb": p["rel_emb"].astype(jnp.bfloat16),
        # Single BN-folded [3D, W] bf16 MXU weight.
        "w1": (p["w1"] * scale[None, :]).astype(jnp.bfloat16),
        "b1": (p["b1"] * scale + shift)[None, :].astype(jnp.float32),
        "w2_row": p["w2"].T.astype(jnp.float32),               # [1, W]
        "b2": p["b2"].reshape(1, 1).astype(jnp.float32),
    }


# ----------------------------------------------------------------- forward ---

@jax.jit
def baseline_embeddings_only_forward(e1_idx, rel_idx, e2_idx, kparams):
    B = e1_idx.shape[0]
    D = kparams["ent_emb"].shape[1]
    W = kparams["w1"].shape[1]
    K = 3 * D
    tb, n_blocks, Bp = _choose_batch_tile(B, K, W)

    if Bp != B:
        # Pad the cheap index vectors (index 0 rows; sliced off below) instead
        # of re-materializing the [Bp, 3D] activations with jnp.pad.
        pad = (0, Bp - B)
        e1_idx = jnp.pad(e1_idx, pad)
        rel_idx = jnp.pad(rel_idx, pad)
        e2_idx = jnp.pad(e2_idx, pad)

    # Gather + concat fuse into one XLA fusion writing the bf16 [Bp, 3D] slab once.
    x = jnp.concatenate([kparams["ent_emb"][e1_idx],
                         kparams["rel_emb"][rel_idx],
                         kparams["ent_emb"][e2_idx]], axis=1)

    out_row = shallom_forward(x, kparams["w1"], kparams["b1"],
                              kparams["w2_row"], kparams["b2"], tb, n_blocks)
    return out_row.reshape(-1, 1)[:B]                        # [B, 1]


# -------------------------------------------------------------------- main ---

if __name__ == "__main__":
    # Small shapes consistent with the module.
    embedding_dim = 10                      # -> shallom_width = int(12.8*10) = 128
    num_entities = 20
    num_relations = 5
    batch = 8

    key = jax.random.PRNGKey(0)
    k_params, k_e1, k_rel, k_e2 = jax.random.split(key, 4)
    params = init_params(k_params, num_entities, num_relations, embedding_dim)
    kparams = prepare_kernel_params(params)

    e1_idx = jax.random.randint(k_e1, (batch,), 0, num_entities)
    rel_idx = jax.random.randint(k_rel, (batch,), 0, num_relations)
    e2_idx = jax.random.randint(k_e2, (batch,), 0, num_entities)

    out = baseline_embeddings_only_forward(e1_idx, rel_idx, e2_idx, kparams)
    out = jax.block_until_ready(out)

    # Pure-JAX f32 reference (unfolded params) of the full forward pass.
    x = jnp.concatenate(
        [params["ent_emb"][e1_idx], params["rel_emb"][rel_idx], params["ent_emb"][e2_idx]],
        axis=1)
    scale = params["gamma"] / jnp.sqrt(params["running_var"] + params["eps"])
    shift = params["beta"] - params["running_mean"] * scale
    h_ref = jnp.maximum((x @ params["w1"] + params["b1"]) * scale + shift, 0.0)
    ref = jax.nn.sigmoid(h_ref @ params["w2"] + params["b2"])

    assert out.shape == (batch, 1)
    # bf16 activations + bf16 BN-folded weights (f32 accumulation) -> loose tol.
    assert jnp.allclose(out, ref, atol=3e-2, rtol=3e-2)

    print("KERNEL_OK")
</pallas_src>

<mosaic_0001>
module attributes {stable_mosaic.version = 11 : i64} {
  func.func @shallom_kernel(%arg0: i32, %arg1: memref<128x30xbf16, #tpu.memory_space<vmem>>, %arg2: memref<30x128xbf16, #tpu.memory_space<vmem>>, %arg3: memref<1x128xf32, #tpu.memory_space<vmem>>, %arg4: memref<1x128xf32, #tpu.memory_space<vmem>>, %arg5: memref<1x1xf32, #tpu.memory_space<vmem>>, %arg6: memref<1x128xf32, #tpu.memory_space<vmem>>) attributes {dimension_semantics = [#tpu.dimension_semantics<parallel>], iteration_bounds = array<i64: 1>, scalar_prefetch = 0 : i64, scratch_operands = 0 : i64, tpu.core_type = #tpu.core_type<tc>, window_params = [{transform_indices = @transform_0, window_bounds = array<i64: 128, 30>}, {pipeline_mode = #tpu.pipeline_mode<synchronous>, transform_indices = @transform_1, window_bounds = array<i64: 30, 128>}, {pipeline_mode = #tpu.pipeline_mode<synchronous>, transform_indices = @transform_2, window_bounds = array<i64: 1, 128>}, {pipeline_mode = #tpu.pipeline_mode<synchronous>, transform_indices = @transform_3, window_bounds = array<i64: 1, 128>}, {pipeline_mode = #tpu.pipeline_mode<synchronous>, transform_indices = @transform_4, window_bounds = array<i64: 1, 1>}, {transform_indices = @transform_5, window_bounds = array<i64: 1, 128>}]} {
    %c0 = arith.constant 0 : index
    %c0_0 = arith.constant 0 : index
    %0 = vector.load %arg1[%c0, %c0_0] : memref<128x30xbf16, #tpu.memory_space<vmem>>, vector<128x30xbf16>
    %c0_1 = arith.constant 0 : index
    %c0_2 = arith.constant 0 : index
    %1 = vector.load %arg2[%c0_1, %c0_2] : memref<30x128xbf16, #tpu.memory_space<vmem>>, vector<30x128xbf16>
    %cst = arith.constant dense<0.000000e+00> : vector<128x128xf32>
    %2 = tpu.matmul %0, %1, %cst {dimension_numbers = #tpu.dot_dimension_numbers<[1], [0], [0], [1], [0, 0, 1, 1], [], []>} : vector<128x30xbf16>, vector<30x128xbf16>, vector<128x128xf32> -> vector<128x128xf32>
    %c0_3 = arith.constant 0 : index
    %c0_4 = arith.constant 0 : index
    %3 = vector.load %arg3[%c0_3, %c0_4] : memref<1x128xf32, #tpu.memory_space<vmem>>, vector<1x128xf32>
    %4 = vector.broadcast %3 : vector<1x128xf32> to vector<128x128xf32>
    %5 = arith.addf %2, %4 : vector<128x128xf32>
    %cst_5 = arith.constant 0.000000e+00 : f32
    %6 = vector.broadcast %cst_5 : f32 to vector<128x128xf32>
    %7 = arith.maximumf %5, %6 : vector<128x128xf32>
    %c0_6 = arith.constant 0 : index
    %c0_7 = arith.constant 0 : index
    %8 = vector.load %arg4[%c0_6, %c0_7] : memref<1x128xf32, #tpu.memory_space<vmem>>, vector<1x128xf32>
    %9 = vector.broadcast %8 : vector<1x128xf32> to vector<128x128xf32>
    %10 = arith.mulf %7, %9 : vector<128x128xf32>
    %cst_8 = arith.constant dense<0.000000e+00> : vector<128xf32>
    %11 = vector.multi_reduction <add>, %10, %cst_8 [1] : vector<128x128xf32> to vector<128xf32>
    %12 = vector.shape_cast %11 : vector<128xf32> to vector<1x128xf32>
    %c0_9 = arith.constant 0 : index
    %c0_10 = arith.constant 0 : index
    %13 = vector.load %arg5[%c0_9, %c0_10] : memref<1x1xf32, #tpu.memory_space<vmem>>, vector<1x1xf32>
    %14 = vector.broadcast %13 : vector<1x1xf32> to vector<1x128xf32>
    %15 = arith.addf %12, %14 : vector<1x128xf32>
    %16 = arith.negf %15 : vector<1x128xf32>
    %17 = math.exp %16 : vector<1x128xf32>
    %cst_11 = arith.constant 1.000000e+00 : f32
    %18 = vector.broadcast %cst_11 : f32 to vector<1x128xf32>
    %19 = arith.addf %18, %17 : vector<1x128xf32>
    %20 = arith.divf %18, %19 : vector<1x128xf32>
    %c0_12 = arith.constant 0 : index
    %c0_13 = arith.constant 0 : index
    %21 = vector.load %arg6[%c0_12, %c0_13] : memref<1x128xf32, #tpu.memory_space<vmem>>, vector<1x128xf32>
    tpu.vector_store %arg6[%c0_12, %c0_13], %20 {strides = array<i32>} : memref<1x128xf32, #tpu.memory_space<vmem>>, vector<1x128xf32>,
    return
  }
  func.func @transform_0(%arg0: i32) -> (i32, i32) {
    %c0_i32 = arith.constant 0 : i32
    %c0_i32_0 = arith.constant 0 : i32
    return %arg0, %c0_i32 : i32, i32
  }
  func.func @transform_1(%arg0: i32) -> (i32, i32) {
    %c0_i32 = arith.constant 0 : i32
    %c0_i32_0 = arith.constant 0 : i32
    %c0_i32_1 = arith.constant 0 : i32
    return %c0_i32, %c0_i32_0 : i32, i32
  }
  func.func @transform_2(%arg0: i32) -> (i32, i32) {
    %c0_i32 = arith.constant 0 : i32
    %c0_i32_0 = arith.constant 0 : i32
    %c0_i32_1 = arith.constant 0 : i32
    return %c0_i32, %c0_i32_0 : i32, i32
  }
  func.func @transform_3(%arg0: i32) -> (i32, i32) {
    %c0_i32 = arith.constant 0 : i32
    %c0_i32_0 = arith.constant 0 : i32
    %c0_i32_1 = arith.constant 0 : i32
    return %c0_i32, %c0_i32_0 : i32, i32
  }
  func.func @transform_4(%arg0: i32) -> (i32, i32) {
    %c0_i32 = arith.constant 0 : i32
    %c0_i32_0 = arith.constant 0 : i32
    %c0_i32_1 = arith.constant 0 : i32
    return %c0_i32, %c0_i32_0 : i32, i32
  }
  func.func @transform_5(%arg0: i32) -> (i32, i32) {
    %c0_i32 = arith.constant 0 : i32
    %c0_i32_0 = arith.constant 0 : i32
    return %c0_i32, %arg0 : i32, i32
  }
}

</mosaic_0001>

<llo_original>
// kernel: baseline_embeddings_only_forward.1
$region0: #{baseline_embeddings_only_forward.1}
  #allocation0 [shape = 'u32[]', space=smem, size = 0x4, offset = 0x4, fixed_abs, tag = 'smem constant byte address 0x4 - core index']
  #allocation1 [shape = 'u32[72,128]{1,0:T(1,128)}', space=vmem, size = 0x9000, scoped, tag = 'internal scratch']
  #allocation2 [shape = 'f32[1,1]{1,0:T(1,128)S(1)}', space=vmem, size = 0x200, scoped, tag = 'scoped memory for baseline_embeddings_only_forward.1']
  %s0 = inlined_call_operand.vmem [shape: bf16[128,30], index: 0, kind: input, shape index: {}]
  %s1 = inlined_call_operand.vmem [shape: bf16[30,128], index: 1, kind: input, shape index: {}]
  %s2 = inlined_call_operand.vmem [shape: f32[1,128], index: 2, kind: input, shape index: {}]
  %s3 = inlined_call_operand.vmem [shape: f32[1,128], index: 3, kind: input, shape index: {}]
  %s4 = inlined_call_operand.<no memory space> [shape: f32[1,1], index: 4, kind: input, shape index: {}]
  %s5 = inlined_call_operand.vmem [shape: f32[1,128], index: 5, kind: output, shape index: {}]
  %s6 = sld [smem:[#allocation0]]
  $region30: #{baseline_embeddings_only_forward.1} parent=0
    _
  %s8 = ssub.s32 1, %s6
  %s9 = scalar_select 0, %s8, %s6
  %v10 = vstv %s4
  %11 = vst [vmem:[#allocation2] sm:$0x1] %v10
  // Predicated region
  $region2: #{baseline_embeddings_only_forward.1} parent=0 // pred_check
    _
  $region3: #{baseline_embeddings_only_forward.1} parent=0 // pred_check_branch
    %13 = sbr.rel (0) target = $region5
  $region4: #{baseline_embeddings_only_forward.1} parent=0 // pred_region
    _
  $region5: #{baseline_embeddings_only_forward.1} parent=0 // pred_fallthru
    _
  // Predicated region
  $region6: #{baseline_embeddings_only_forward.1} parent=0 // pred_check
    _
  $region7: #{baseline_embeddings_only_forward.1} parent=0 // pred_check_branch
    %15 = sbr.rel (0) target = $region9
  $region8: #{baseline_embeddings_only_forward.1} parent=0 // pred_region
    _
  $region9: #{baseline_embeddings_only_forward.1} parent=0 // pred_fallthru
    _
  // Predicated region
  $region10: #{baseline_embeddings_only_forward.1} parent=0 // pred_check
    _
  $region11: #{baseline_embeddings_only_forward.1} parent=0 // pred_check_branch
    %17 = sbr.rel (0) target = $region13
  $region12: #{baseline_embeddings_only_forward.1} parent=0 // pred_region
    _
  $region13: #{baseline_embeddings_only_forward.1} parent=0 // pred_fallthru
    _
  // Predicated region
  $region14: #{baseline_embeddings_only_forward.1} parent=0 // pred_check
    _
  $region15: #{baseline_embeddings_only_forward.1} parent=0 // pred_check_branch
    %19 = sbr.rel (0) target = $region17
  $region16: #{baseline_embeddings_only_forward.1} parent=0 // pred_region
    _
  $region17: #{baseline_embeddings_only_forward.1} parent=0 // pred_fallthru
    _
  // Predicated region
  $region18: #{baseline_embeddings_only_forward.1} parent=0 // pred_check
    _
  $region19: #{baseline_embeddings_only_forward.1} parent=0 // pred_check_branch
    %21 = sbr.rel (0) target = $region21
  $region20: #{baseline_embeddings_only_forward.1} parent=0 // pred_region
    _
  $region21: #{baseline_embeddings_only_forward.1} parent=0 // pred_fallthru
    _
  %v23 = vld [vmem:[%s0] sm:$0xf]
  %v24 = vld [vmem:[%s0 + $0x4] sm:$0xf]
  %v25 = vld [vmem:[%s0 + $0x8] sm:$0xf]
  %v26 = vld [vmem:[%s0 + $0xc] sm:$0xf]
  %v27 = vld [vmem:[%s0 + $0x10] sm:$0xf]
  %v28 = vld [vmem:[%s0 + $0x14] sm:$0xf]
  %v29 = vld [vmem:[%s0 + $0x18] sm:$0xf]
  %v30 = vld [vmem:[%s0 + $0x1c] sm:$0xf]
  %v31 = vld [vmem:[%s0 + $0x20] sm:$0xf]
  %v32 = vld [vmem:[%s0 + $0x24] sm:$0xf]
  %v33 = vld [vmem:[%s0 + $0x28] sm:$0xf]
  %v34 = vld [vmem:[%s0 + $0x2c] sm:$0xf]
  %v35 = vld [vmem:[%s0 + $0x30] sm:$0xf]
  %v36 = vld [vmem:[%s0 + $0x34] sm:$0xf]
  %v37 = vld [vmem:[%s0 + $0x38] sm:$0xf]
  %v38 = vld [vmem:[%s0 + $0x3c] sm:$0xf]
  %v39 = vld [vmem:[%s1] sm:$0xf]
  %v40 = vld [vmem:[%s1 + $0x4] sm:$0xf]
  %v41 = vld [vmem:[%s1 + $0x8] sm:$0xf]
  %v42 = vld [vmem:[%s1 + $0xc] sm:$0x7]
  %v43 = vld [vmem:[%s2] sm:$0x1]
  %v45 = vperm.slane %v43, 0
  %v63 = vunpack.c.l.b16 %v23
  %v64 = vunpack.c.l.b16 %v24
  %v65 = vunpack.c.l.b16 %v25
  %v66 = vunpack.c.l.b16 %v26
  %v67 = vunpack.c.l.b16 %v27
  %v68 = vunpack.c.l.b16 %v28
  %v69 = vunpack.c.l.b16 %v29
  %v70 = vunpack.c.l.b16 %v30
  %v71 = vunpack.c.l.b16 %v31
  %v72 = vunpack.c.l.b16 %v32
  %v73 = vunpack.c.l.b16 %v33
  %v74 = vunpack.c.l.b16 %v34
  %v75 = vunpack.c.l.b16 %v35
  %v76 = vunpack.c.l.b16 %v36
  %v77 = vunpack.c.l.b16 %v37
  %v78 = vunpack.c.l.b16 %v38
  %v79 = vpack.c.b16 %v64, %v63
  %v80 = vpack.c.b16 %v66, %v65
  %v81 = vpack.c.b16 %v68, %v67
  %v82 = vpack.c.b16 %v70, %v69
  %v83 = vpack.c.b16 %v72, %v71
  %v84 = vpack.c.b16 %v74, %v73
  %v85 = vpack.c.b16 %v76, %v75
  %v86 = vpack.c.b16 %v78, %v77
  %v91 = vunpack.c.l.b16 %v39
  %v92 = vunpack.c.l.b16 %v40
  %v93 = vunpack.c.l.b16 %v41
  %v94 = vunpack.c.l.b16 %v42
  %v95 = vpack.c.b16 %v92, %v91
  %v96 = vpack.c.b16 %v94, %v93
  %vm98 = vcmask 244736
  %v100 = vsel %vm98, %v79, 0
  %v103 = vsel %vm98, %v80, 0
  %v106 = vsel %vm98, %v81, 0
  %v109 = vsel %vm98, %v82, 0
  %v112 = vsel %vm98, %v83, 0
  %v115 = vsel %vm98, %v84, 0
  %v118 = vsel %vm98, %v85, 0
  %v121 = vsel %vm98, %v86, 0
  %vm123 = vcmask 1046528
  %v125 = vsel %vm123, %v96, 0
  %127 = vmatpush.bf16.msra.mxu0 0
  %128 = vmatpush.bf16.msra.mxu0 0
  %129 = vmatpush.bf16.msra.mxu0 0
  %130 = vmatpush.bf16.msra.mxu0 0
  %131 = vmatpush.bf16.msra.mxu0 0
  %132 = vmatpush.bf16.msra.mxu0 0
  %133 = vmatpush.bf16.msra.mxu0 %v125
  %134 = vmatpush.bf16.msra.mxu0 %v95
  %135 = vmatmul.bf16.gmra.mxu0 %v100
  %v136 = vpop.f32.mrf.mxu0
  %v137 = vadd.f32 %v45, %v136
  %v138 = vpop.f32.mrf.mxu0
  %v139 = vadd.f32 %v45, %v138
  %140 = vmatmul.bf16.gmra.mxu0 %v103
  %v141 = vpop.f32.mrf.mxu0
  %v142 = vadd.f32 %v45, %v141
  %v143 = vpop.f32.mrf.mxu0
  %v144 = vadd.f32 %v45, %v143
  %145 = vmatmul.bf16.gmra.mxu0 %v106
  %v146 = vpop.f32.mrf.mxu0
  %v147 = vadd.f32 %v45, %v146
  %v148 = vpop.f32.mrf.mxu0
  %v149 = vadd.f32 %v45, %v148
  %150 = vmatmul.bf16.gmra.mxu0 %v109
  %v151 = vpop.f32.mrf.mxu0
  %v152 = vadd.f32 %v45, %v151
  %v153 = vpop.f32.mrf.mxu0
  %v154 = vadd.f32 %v45, %v153
  %155 = vmatmul.bf16.gmra.mxu0 %v112
  %v156 = vpop.f32.mrf.mxu0
  %v157 = vadd.f32 %v45, %v156
  %v158 = vpop.f32.mrf.mxu0
  %v159 = vadd.f32 %v45, %v158
  %160 = vmatmul.bf16.gmra.mxu0 %v115
  %v161 = vpop.f32.mrf.mxu0
  %v162 = vadd.f32 %v45, %v161
  %v163 = vpop.f32.mrf.mxu0
  %v164 = vadd.f32 %v45, %v163
  %165 = vmatmul.bf16.gmra.mxu0 %v118
  %v166 = vpop.f32.mrf.mxu0
  %v167 = vadd.f32 %v45, %v166
  %v168 = vpop.f32.mrf.mxu0
  %v169 = vadd.f32 %v45, %v168
  %170 = vmatmul.bf16.gmra.mxu0 %v121
  %v171 = vpop.f32.mrf.mxu0
  %v172 = vadd.f32 %v45, %v171
  %v173 = vpop.f32.mrf.mxu0
  %v174 = vadd.f32 %v45, %v173
  %175 = vdwg.mxu0
  %v176 = vmax.f32 %v137, 0.0
  %v177 = vmax.f32 %v139, 0.0
  %v178 = vmax.f32 %v142, 0.0
  %v179 = vmax.f32 %v144, 0.0
  %v180 = vmax.f32 %v147, 0.0
  %v181 = vmax.f32 %v149, 0.0
  %v182 = vmax.f32 %v152, 0.0
  %v183 = vmax.f32 %v154, 0.0
  %v184 = vmax.f32 %v157, 0.0
  %v185 = vmax.f32 %v159, 0.0
  %v186 = vmax.f32 %v162, 0.0
  %v187 = vmax.f32 %v164, 0.0
  %v188 = vmax.f32 %v167, 0.0
  %v189 = vmax.f32 %v169, 0.0
  %v190 = vmax.f32 %v172, 0.0
  %v191 = vmax.f32 %v174, 0.0
  %v192 = vld [vmem:[%s3] sm:$0x1]
  %v194 = vperm.slane %v192, 0
  %v196 = vmul.f32 %v176, %v194
  %v197 = vmul.f32 %v177, %v194
  %v198 = vmul.f32 %v178, %v194
  %v199 = vmul.f32 %v179, %v194
  %v200 = vmul.f32 %v180, %v194
  %v201 = vmul.f32 %v181, %v194
  %v202 = vmul.f32 %v182, %v194
  %v203 = vmul.f32 %v183, %v194
  %v204 = vmul.f32 %v184, %v194
  %v205 = vmul.f32 %v185, %v194
  %v206 = vmul.f32 %v186, %v194
  %v207 = vmul.f32 %v187, %v194
  %v208 = vmul.f32 %v188, %v194
  %v209 = vmul.f32 %v189, %v194
  %v210 = vmul.f32 %v190, %v194
  %v211 = vmul.f32 %v191, %v194
  %212 = vadd.xlane.f32.xlu0 %v196
  %v213 = vpop.xlane.xlu0 %212
  %214 = vadd.xlane.f32.xlu0 %v197
  %v215 = vpop.xlane.xlu0 %214
  %216 = vadd.xlane.f32.xlu0 %v198
  %v217 = vpop.xlane.xlu0 %216
  %218 = vadd.xlane.f32.xlu0 %v199
  %v219 = vpop.xlane.xlu0 %218
  %220 = vadd.xlane.f32.xlu0 %v200
  %v221 = vpop.xlane.xlu0 %220
  %222 = vadd.xlane.f32.xlu0 %v201
  %v223 = vpop.xlane.xlu0 %222
  %224 = vadd.xlane.f32.xlu0 %v202
  %v225 = vpop.xlane.xlu0 %224
  %226 = vadd.xlane.f32.xlu0 %v203
  %v227 = vpop.xlane.xlu0 %226
  %228 = vadd.xlane.f32.xlu0 %v204
  %v229 = vpop.xlane.xlu0 %228
  %230 = vadd.xlane.f32.xlu0 %v205
  %v231 = vpop.xlane.xlu0 %230
  %232 = vadd.xlane.f32.xlu0 %v206
  %v233 = vpop.xlane.xlu0 %232
  %234 = vadd.xlane.f32.xlu0 %v207
  %v235 = vpop.xlane.xlu0 %234
  %236 = vadd.xlane.f32.xlu0 %v208
  %v237 = vpop.xlane.xlu0 %236
  %238 = vadd.xlane.f32.xlu0 %v209
  %v239 = vpop.xlane.xlu0 %238
  %240 = vadd.xlane.f32.xlu0 %v210
  %v241 = vpop.xlane.xlu0 %240
  %242 = vadd.xlane.f32.xlu0 %v211
  %v243 = vpop.xlane.xlu0 %242
  %v244 = vld [vmem:[#allocation2] sm:$0x1]
  %246 = vset.pattern.permute.xlu0 0
  %247 = vperm.xlu0 %246, %v244
  %v248 = vpop.permute.xlu0 %247
  %v250 = vperm.slane %v248, 0
  %v251 = vadd.f32 %v213, %v250
  %v252 = vadd.f32 %v215, %v250
  %v253 = vadd.f32 %v217, %v250
  %v254 = vadd.f32 %v219, %v250
  %v255 = vadd.f32 %v221, %v250
  %v256 = vadd.f32 %v223, %v250
  %v257 = vadd.f32 %v225, %v250
  %v258 = vadd.f32 %v227, %v250
  %v259 = vadd.f32 %v229, %v250
  %v260 = vadd.f32 %v231, %v250
  %v261 = vadd.f32 %v233, %v250
  %v262 = vadd.f32 %v235, %v250
  %v263 = vadd.f32 %v237, %v250
  %v264 = vadd.f32 %v239, %v250
  %v265 = vadd.f32 %v241, %v250
  %v266 = vadd.f32 %v243, %v250
  %v267 = vxor.u32 %v251, 2147483648
  %v268 = vxor.u32 %v252, 2147483648
  %v269 = vxor.u32 %v253, 2147483648
  %v270 = vxor.u32 %v254, 2147483648
  %v271 = vxor.u32 %v255, 2147483648
  %v272 = vxor.u32 %v256, 2147483648
  %v273 = vxor.u32 %v257, 2147483648
  %v274 = vxor.u32 %v258, 2147483648
  %v275 = vxor.u32 %v259, 2147483648
  %v276 = vxor.u32 %v260, 2147483648
  %v277 = vxor.u32 %v261, 2147483648
  %v278 = vxor.u32 %v262, 2147483648
  %v279 = vxor.u32 %v263, 2147483648
  %v280 = vxor.u32 %v264, 2147483648
  %v281 = vxor.u32 %v265, 2147483648
  %v282 = vxor.u32 %v266, 2147483648
  %v283 = vmul.f32 %v267, 1.442695
  %v284 = vpow.pop %v283
  %v285 = vmul.f32 %v268, 1.442695
  %v286 = vpow.pop %v285
  %v287 = vmul.f32 %v269, 1.442695
  %v288 = vpow.pop %v287
  %v289 = vmul.f32 %v270, 1.442695
  %v290 = vpow.pop %v289
  %v291 = vmul.f32 %v271, 1.442695
  %v292 = vpow.pop %v291
  %v293 = vmul.f32 %v272, 1.442695
  %v294 = vpow.pop %v293
  %v295 = vmul.f32 %v273, 1.442695
  %v296 = vpow.pop %v295
  %v297 = vmul.f32 %v274, 1.442695
  %v298 = vpow.pop %v297
  %v299 = vmul.f32 %v275, 1.442695
  %v300 = vpow.pop %v299
  %v301 = vmul.f32 %v276, 1.442695
  %v302 = vpow.pop %v301
  %v303 = vmul.f32 %v277, 1.442695
  %v304 = vpow.pop %v303
  %v305 = vmul.f32 %v278, 1.442695
  %v306 = vpow.pop %v305
  %v307 = vmul.f32 %v279, 1.442695
  %v308 = vpow.pop %v307
  %v309 = vmul.f32 %v280, 1.442695
  %v310 = vpow.pop %v309
  %v311 = vmul.f32 %v281, 1.442695
  %v312 = vpow.pop %v311
  %v313 = vmul.f32 %v282, 1.442695
  %v314 = vpow.pop %v313
  %v315 = vadd.f32 %v284, 1.0
  %v316 = vadd.f32 %v286, 1.0
  %v317 = vadd.f32 %v288, 1.0
  %v318 = vadd.f32 %v290, 1.0
  %v319 = vadd.f32 %v292, 1.0
  %v320 = vadd.f32 %v294, 1.0
  %v321 = vadd.f32 %v296, 1.0
  %v322 = vadd.f32 %v298, 1.0
  %v323 = vadd.f32 %v300, 1.0
  %v324 = vadd.f32 %v302, 1.0
  %v325 = vadd.f32 %v304, 1.0
  %v326 = vadd.f32 %v306, 1.0
  %v327 = vadd.f32 %v308, 1.0
  %v328 = vadd.f32 %v310, 1.0
  %v329 = vadd.f32 %v312, 1.0
  %v330 = vadd.f32 %v314, 1.0
  %v331 = vrcp.pop %v315
  %v332 = vmul.f32 %v315, %v331
  %v333 = vsub.f32 1.0, %v332
  %v334 = vmul.f32 %v331, %v333
  %v335 = vadd.f32 %v331, %v334
  %vm336 = vweird.f32 %v315
  %vm337 = vweird.f32 %v331
  %vm338 = vmor %vm336, %vm337
  %v339 = vsel %vm338, %v331, %v335
  %v340 = vand.u32 2147483647, %v315
  %vm341 = vcmp.eq.f32.partialorder %v340, 8.507059e+37
  %v342 = vand.u32 %v315, 2147483648
  %v343 = vor.u32 1.1754944e-38, %v342
  %v344 = vsel %vm341, %v343, %v339
  %v345 = vmul.f32 1.0, %v344
  %v346 = vrcp.pop %v316
  %v347 = vmul.f32 %v316, %v346
  %v348 = vsub.f32 1.0, %v347
  %v349 = vmul.f32 %v346, %v348
  %v350 = vadd.f32 %v346, %v349
  %vm351 = vweird.f32 %v316
  %vm352 = vweird.f32 %v346
  %vm353 = vmor %vm351, %vm352
  %v354 = vsel %vm353, %v346, %v350
  %v355 = vand.u32 2147483647, %v316
  %vm356 = vcmp.eq.f32.partialorder %v355, 8.507059e+37
  %v357 = vand.u32 %v316, 2147483648
  %v358 = vor.u32 1.1754944e-38, %v357
  %v359 = vsel %vm356, %v358, %v354
  %v360 = vmul.f32 1.0, %v359
  %v361 = vrcp.pop %v317
  %v362 = vmul.f32 %v317, %v361
  %v363 = vsub.f32 1.0, %v362
  %v364 = vmul.f32 %v361, %v363
  %v365 = vadd.f32 %v361, %v364
  %vm366 = vweird.f32 %v317
  %vm367 = vweird.f32 %v361
  %vm368 = vmor %vm366, %vm367
  %v369 = vsel %vm368, %v361, %v365
  %v370 = vand.u32 2147483647, %v317
  %vm371 = vcmp.eq.f32.partialorder %v370, 8.507059e+37
  %v372 = vand.u32 %v317, 2147483648
  %v373 = vor.u32 1.1754944e-38, %v372
  %v374 = vsel %vm371, %v373, %v369
  %v375 = vmul.f32 1.0, %v374
  %v376 = vrcp.pop %v318
  %v377 = vmul.f32 %v318, %v376
  %v378 = vsub.f32 1.0, %v377
  %v379 = vmul.f32 %v376, %v378
  %v380 = vadd.f32 %v376, %v379
  %vm381 = vweird.f32 %v318
  %vm382 = vweird.f32 %v376
  %vm383 = vmor %vm381, %vm382
  %v384 = vsel %vm383, %v376, %v380
  %v385 = vand.u32 2147483647, %v318
  %vm386 = vcmp.eq.f32.partialorder %v385, 8.507059e+37
  %v387 = vand.u32 %v318, 2147483648
  %v388 = vor.u32 1.1754944e-38, %v387
  %v389 = vsel %vm386, %v388, %v384
  %v390 = vmul.f32 1.0, %v389
  %v391 = vrcp.pop %v319
  %v392 = vmul.f32 %v319, %v391
  %v393 = vsub.f32 1.0, %v392
  %v394 = vmul.f32 %v391, %v393
  %v395 = vadd.f32 %v391, %v394
  %vm396 = vweird.f32 %v319
  %vm397 = vweird.f32 %v391
  %vm398 = vmor %vm396, %vm397
  %v399 = vsel %vm398, %v391, %v395
  %v400 = vand.u32 2147483647, %v319
  %vm401 = vcmp.eq.f32.partialorder %v400, 8.507059e+37
  %v402 = vand.u32 %v319, 2147483648
  %v403 = vor.u32 1.1754944e-38, %v402
  %v404 = vsel %vm401, %v403, %v399
  %v405 = vmul.f32 1.0, %v404
  %v406 = vrcp.pop %v320
  %v407 = vmul.f32 %v320, %v406
  %v408 = vsub.f32 1.0, %v407
  %v409 = vmul.f32 %v406, %v408
  %v410 = vadd.f32 %v406, %v409
  %vm411 = vweird.f32 %v320
  %vm412 = vweird.f32 %v406
  %vm413 = vmor %vm411, %vm412
  %v414 = vsel %vm413, %v406, %v410
  %v415 = vand.u32 2147483647, %v320
  %vm416 = vcmp.eq.f32.partialorder %v415, 8.507059e+37
  %v417 = vand.u32 %v320, 2147483648
  %v418 = vor.u32 1.1754944e-38, %v417
  %v419 = vsel %vm416, %v418, %v414
  %v420 = vmul.f32 1.0, %v419
  %v421 = vrcp.pop %v321
  %v422 = vmul.f32 %v321, %v421
  %v423 = vsub.f32 1.0, %v422
  %v424 = vmul.f32 %v421, %v423
  %v425 = vadd.f32 %v421, %v424
  %vm426 = vweird.f32 %v321
  %vm427 = vweird.f32 %v421
  %vm428 = vmor %vm426, %vm427
  %v429 = vsel %vm428, %v421, %v425
  %v430 = vand.u32 2147483647, %v321
  %vm431 = vcmp.eq.f32.partialorder %v430, 8.507059e+37
  %v432 = vand.u32 %v321, 2147483648
  %v433 = vor.u32 1.1754944e-38, %v432
  %v434 = vsel %vm431, %v433, %v429
  %v435 = vmul.f32 1.0, %v434
  %v436 = vrcp.pop %v322
  %v437 = vmul.f32 %v322, %v436
  %v438 = vsub.f32 1.0, %v437
  %v439 = vmul.f32 %v436, %v438
  %v440 = vadd.f32 %v436, %v439
  %vm441 = vweird.f32 %v322
  %vm442 = vweird.f32 %v436
  %vm443 = vmor %vm441, %vm442
  %v444 = vsel %vm443, %v436, %v440
  %v445 = vand.u32 2147483647, %v322
  %vm446 = vcmp.eq.f32.partialorder %v445, 8.507059e+37
  %v447 = vand.u32 %v322, 2147483648
  %v448 = vor.u32 1.1754944e-38, %v447
  %v449 = vsel %vm446, %v448, %v444
  %v450 = vmul.f32 1.0, %v449
  %v451 = vrcp.pop %v323
  %v452 = vmul.f32 %v323, %v451
  %v453 = vsub.f32 1.0, %v452
  %v454 = vmul.f32 %v451, %v453
  %v455 = vadd.f32 %v451, %v454
  %vm456 = vweird.f32 %v323
  %vm457 = vweird.f32 %v451
  %vm458 = vmor %vm456, %vm457
  %v459 = vsel %vm458, %v451, %v455
  %v460 = vand.u32 2147483647, %v323
  %vm461 = vcmp.eq.f32.partialorder %v460, 8.507059e+37
  %v462 = vand.u32 %v323, 2147483648
  %v463 = vor.u32 1.1754944e-38, %v462
  %v464 = vsel %vm461, %v463, %v459
  %v465 = vmul.f32 1.0, %v464
  %v466 = vrcp.pop %v324
  %v467 = vmul.f32 %v324, %v466
  %v468 = vsub.f32 1.0, %v467
  %v469 = vmul.f32 %v466, %v468
  %v470 = vadd.f32 %v466, %v469
  %vm471 = vweird.f32 %v324
  %vm472 = vweird.f32 %v466
  %vm473 = vmor %vm471, %vm472
  %v474 = vsel %vm473, %v466, %v470
  %v475 = vand.u32 2147483647, %v324
  %vm476 = vcmp.eq.f32.partialorder %v475, 8.507059e+37
  %v477 = vand.u32 %v324, 2147483648
  %v478 = vor.u32 1.1754944e-38, %v477
  %v479 = vsel %vm476, %v478, %v474
  %v480 = vmul.f32 1.0, %v479
  %v481 = vrcp.pop %v325
  %v482 = vmul.f32 %v325, %v481
  %v483 = vsub.f32 1.0, %v482
  %v484 = vmul.f32 %v481, %v483
  %v485 = vadd.f32 %v481, %v484
  %vm486 = vweird.f32 %v325
  %vm487 = vweird.f32 %v481
  %vm488 = vmor %vm486, %vm487
  %v489 = vsel %vm488, %v481, %v485
  %v490 = vand.u32 2147483647, %v325
  %vm491 = vcmp.eq.f32.partialorder %v490, 8.507059e+37
  %v492 = vand.u32 %v325, 2147483648
  %v493 = vor.u32 1.1754944e-38, %v492
  %v494 = vsel %vm491, %v493, %v489
  %v495 = vmul.f32 1.0, %v494
  %v496 = vrcp.pop %v326
  %v497 = vmul.f32 %v326, %v496
  %v498 = vsub.f32 1.0, %v497
  %v499 = vmul.f32 %v496, %v498
  %v500 = vadd.f32 %v496, %v499
  %vm501 = vweird.f32 %v326
  %vm502 = vweird.f32 %v496
  %vm503 = vmor %vm501, %vm502
  %v504 = vsel %vm503, %v496, %v500
  %v505 = vand.u32 2147483647, %v326
  %vm506 = vcmp.eq.f32.partialorder %v505, 8.507059e+37
  %v507 = vand.u32 %v326, 2147483648
  %v508 = vor.u32 1.1754944e-38, %v507
  %v509 = vsel %vm506, %v508, %v504
  %v510 = vmul.f32 1.0, %v509
  %v511 = vrcp.pop %v327
  %v512 = vmul.f32 %v327, %v511
  %v513 = vsub.f32 1.0, %v512
  %v514 = vmul.f32 %v511, %v513
  %v515 = vadd.f32 %v511, %v514
  %vm516 = vweird.f32 %v327
  %vm517 = vweird.f32 %v511
  %vm518 = vmor %vm516, %vm517
  %v519 = vsel %vm518, %v511, %v515
  %v520 = vand.u32 2147483647, %v327
  %vm521 = vcmp.eq.f32.partialorder %v520, 8.507059e+37
  %v522 = vand.u32 %v327, 2147483648
  %v523 = vor.u32 1.1754944e-38, %v522
  %v524 = vsel %vm521, %v523, %v519
  %v525 = vmul.f32 1.0, %v524
  %v526 = vrcp.pop %v328
  %v527 = vmul.f32 %v328, %v526
  %v528 = vsub.f32 1.0, %v527
  %v529 = vmul.f32 %v526, %v528
  %v530 = vadd.f32 %v526, %v529
  %vm531 = vweird.f32 %v328
  %vm532 = vweird.f32 %v526
  %vm533 = vmor %vm531, %vm532
  %v534 = vsel %vm533, %v526, %v530
  %v535 = vand.u32 2147483647, %v328
  %vm536 = vcmp.eq.f32.partialorder %v535, 8.507059e+37
  %v537 = vand.u32 %v328, 2147483648
  %v538 = vor.u32 1.1754944e-38, %v537
  %v539 = vsel %vm536, %v538, %v534
  %v540 = vmul.f32 1.0, %v539
  %v541 = vrcp.pop %v329
  %v542 = vmul.f32 %v329, %v541
  %v543 = vsub.f32 1.0, %v542
  %v544 = vmul.f32 %v541, %v543
  %v545 = vadd.f32 %v541, %v544
  %vm546 = vweird.f32 %v329
  %vm547 = vweird.f32 %v541
  %vm548 = vmor %vm546, %vm547
  %v549 = vsel %vm548, %v541, %v545
  %v550 = vand.u32 2147483647, %v329
  %vm551 = vcmp.eq.f32.partialorder %v550, 8.507059e+37
  %v552 = vand.u32 %v329, 2147483648
  %v553 = vor.u32 1.1754944e-38, %v552
  %v554 = vsel %vm551, %v553, %v549
  %v555 = vmul.f32 1.0, %v554
  %v556 = vrcp.pop %v330
  %v557 = vmul.f32 %v330, %v556
  %v558 = vsub.f32 1.0, %v557
  %v559 = vmul.f32 %v556, %v558
  %v560 = vadd.f32 %v556, %v559
  %vm561 = vweird.f32 %v330
  %vm562 = vweird.f32 %v556
  %vm563 = vmor %vm561, %vm562
  %v564 = vsel %vm563, %v556, %v560
  %v565 = vand.u32 2147483647, %v330
  %vm566 = vcmp.eq.f32.partialorder %v565, 8.507059e+37
  %v567 = vand.u32 %v330, 2147483648
  %v568 = vor.u32 1.1754944e-38, %v567
  %v569 = vsel %vm566, %v568, %v564
  %v570 = vmul.f32 1.0, %v569
  %v587 = vlaneseq
  %v588 = vand.u32 %v587, 127
  %v589 = vperm.slane %v345, %v588
  %v590 = vadd.s32 %v588, 4294967288
  %v591 = vperm.slane %v360, %v590
  %vm592 = vcmask 130112
  %v593 = vsel %vm592, %v591, %v589
  %v594 = vadd.s32 %v588, 4294967280
  %v595 = vperm.slane %v375, %v594
  %vm596 = vcmask 195712
  %v597 = vsel %vm596, %v595, %v593
  %v598 = vadd.s32 %v588, 4294967272
  %v599 = vperm.slane %v390, %v598
  %vm600 = vcmask 261312
  %v601 = vsel %vm600, %v599, %v597
  %v602 = vadd.s32 %v588, 4294967264
  %v603 = vperm.slane %v405, %v602
  %vm604 = vcmask 326912
  %v605 = vsel %vm604, %v603, %v601
  %v606 = vadd.s32 %v588, 4294967256
  %v607 = vperm.slane %v420, %v606
  %vm608 = vcmask 392512
  %v609 = vsel %vm608, %v607, %v605
  %v610 = vadd.s32 %v588, 4294967248
  %v611 = vperm.slane %v435, %v610
  %vm612 = vcmask 458112
  %v613 = vsel %vm612, %v611, %v609
  %v614 = vadd.s32 %v588, 4294967240
  %v615 = vperm.slane %v450, %v614
  %vm616 = vcmask 523712
  %v617 = vsel %vm616, %v615, %v613
  %v618 = vadd.s32 %v588, 4294967232
  %v619 = vperm.slane %v465, %v618
  %vm620 = vcmask 589312
  %v621 = vsel %vm620, %v619, %v617
  %v622 = vadd.s32 %v588, 4294967224
  %v623 = vperm.slane %v480, %v622
  %vm624 = vcmask 654912
  %v625 = vsel %vm624, %v623, %v621
  %v626 = vadd.s32 %v588, 4294967216
  %v627 = vperm.slane %v495, %v626
  %vm628 = vcmask 720512
  %v629 = vsel %vm628, %v627, %v625
  %v630 = vadd.s32 %v588, 4294967208
  %v631 = vperm.slane %v510, %v630
  %vm632 = vcmask 786112
  %v633 = vsel %vm632, %v631, %v629
  %v634 = vadd.s32 %v588, 4294967200
  %v635 = vperm.slane %v525, %v634
  %vm636 = vcmask 851712
  %v637 = vsel %vm636, %v635, %v633
  %v638 = vadd.s32 %v588, 4294967192
  %v639 = vperm.slane %v540, %v638
  %vm640 = vcmask 917312
  %v641 = vsel %vm640, %v639, %v637
  %v642 = vadd.s32 %v588, 4294967184
  %v643 = vperm.slane %v555, %v642
  %vm644 = vcmask 982912
  %v645 = vsel %vm644, %v643, %v641
  %v646 = vadd.s32 %v588, 4294967176
  %v647 = vperm.slane %v570, %v646
  %vm648 = vcmask 1048512
  %v649 = vsel %vm648, %v647, %v645
  %651 = vst [vmem:[%s5] sm:$0x1] %v649
  // Predicated region
  $region22: #{baseline_embeddings_only_forward.1} parent=0 // pred_check
    _
  $region23: #{baseline_embeddings_only_forward.1} parent=0 // pred_check_branch
    %653 = sbr.rel (0) target = $region25
  $region24: #{baseline_embeddings_only_forward.1} parent=0 // pred_region
    _
  $region25: #{baseline_embeddings_only_forward.1} parent=0 // pred_fallthru
    _
  // Predicated region
  $region26: #{baseline_embeddings_only_forward.1} parent=0 // pred_check
    _
  $region27: #{baseline_embeddings_only_forward.1} parent=0 // pred_check_branch
    %655 = sbr.rel (0) target = $region29
  $region28: #{baseline_embeddings_only_forward.1} parent=0 // pred_region
    _
  $region29: #{baseline_embeddings_only_forward.1} parent=0 // pred_fallthru
    _

</llo_original>
